<compile_context>
chip_gen: v5e
topology: v5e:2x2
jax: 0.10.0
libtpu: 0.0.40
codegen_flags: <defaults>
</compile_context>

<pallas_src>
import functools

import jax
import jax.numpy as jnp
from jax.experimental import pallas as pl
from jax.experimental.pallas import tpu as pltpu

LANE = 128
SUBLANE_BF16 = 16


def _round_up(x, m):
    return (x + m - 1) // m * m


# ----------------------------- Pallas kernel ---------------------------------

def _actor_critic_kernel(obs_ref,
                         w1_ref, b1_ref,
                         w2_ref, b2_ref,
                         w3_ref, b3_ref,
                         wh_ref, bh_ref,
                         head_ref):
    # All streamed/resident tensors are bf16.  Each dot accumulates in f32 on the MXU;
    # bias add + relu run in bf16 (v6e/v7x VPU is bf16-native; on v5e Mosaic emulates the
    # bf16 elementwise ops in f32 — still correct, marginally more VALU work).
    x = obs_ref[...]
    h = jnp.dot(x, w1_ref[...], preferred_element_type=jnp.float32).astype(jnp.bfloat16)
    h = jnp.maximum(h + b1_ref[...], 0.0)
    h = jnp.dot(h, w2_ref[...], preferred_element_type=jnp.float32).astype(jnp.bfloat16)
    h = jnp.maximum(h + b2_ref[...], 0.0)
    h = jnp.dot(h, w3_ref[...], preferred_element_type=jnp.float32).astype(jnp.bfloat16)
    h = jnp.maximum(h + b3_ref[...], 0.0)
    # Fused actor+critic head: one 128-lane matmul, one unmasked lane-dense bf16 store.
    acc = jnp.dot(h, wh_ref[...], preferred_element_type=jnp.float32).astype(jnp.bfloat16)
    head_ref[...] = acc + bh_ref[...]


def _choose_batch_tiling(batch, block_b):
    """Pick (tile_rows, padded_batch, num_tiles) minimizing batch over-pad."""
    num_tiles = max(1, -(-batch // block_b))
    # v7x has 2 TensorCores: once there is enough work to amortize the ~0.35 us/step grid
    # overhead, make sure the "parallel" batch axis has at least 2 grid steps to shard.
    if batch >= 256 and num_tiles < 2:
        num_tiles = 2
    tb = _round_up(-(-batch // num_tiles), SUBLANE_BF16)
    return tb, tb * num_tiles, num_tiles


def actor_critic_forward(obs, prep, *, action_dim, block_b=2048):
    """obs: [B, obs_dim] f32.  prep: output of prepare_params (bf16 weights, fused head).

    Returns (logits [B, action_dim] f32, value [B, 1] f32).
    """
    B = obs.shape[0]
    k_pad, h1 = prep["w1"].shape
    h2 = prep["w2"].shape[1]
    h3 = prep["w3"].shape[1]
    head_pad = prep["wh"].shape[1]

    tb, b_pad, num_tiles = _choose_batch_tiling(B, block_b)

    # Per-call input prep: single bf16 cast (+ rare K pad to the 16-granule, + batch pad).
    # All weight-side padding / head fusion already happened once in prepare_params.
    obs_p = obs.astype(jnp.bfloat16)
    pad_k = k_pad - obs.shape[1]
    pad_b = b_pad - B
    if pad_k or pad_b:
        obs_p = jnp.pad(obs_p, ((0, pad_b), (0, pad_k)))

    resident = lambda i: (0, 0)   # constant block index -> fetched once, stays VMEM-resident

    head = pl.pallas_call(
        _actor_critic_kernel,
        out_shape=jax.ShapeDtypeStruct((b_pad, head_pad), jnp.bfloat16),
        grid=(num_tiles,),
        in_specs=[
            pl.BlockSpec((tb, k_pad), lambda i: (i, 0)),      # obs tile (double-buffered)
            pl.BlockSpec((k_pad, h1), resident),
            pl.BlockSpec((1, h1), resident),
            pl.BlockSpec((h1, h2), resident),
            pl.BlockSpec((1, h2), resident),
            pl.BlockSpec((h2, h3), resident),
            pl.BlockSpec((1, h3), resident),
            pl.BlockSpec((h3, head_pad), resident),
            pl.BlockSpec((1, head_pad), resident),
        ],
        out_specs=pl.BlockSpec((tb, head_pad), lambda i: (i, 0)),
        compiler_params=pltpu.CompilerParams(
            dimension_semantics=("parallel",)),               # megacore batch sharding (v7x)
    )(obs_p, prep["w1"], prep["b1"], prep["w2"], prep["b2"],
      prep["w3"], prep["b3"], prep["wh"], prep["bh"])

    # Slice padded lanes/rows off OUTSIDE the kernel (keeps the kernel store lane-dense);
    # the sliced heads are tiny, so the f32 upcast here is essentially free.
    logits = head[:B, :action_dim].astype(jnp.float32)
    value = head[:B, action_dim:action_dim + 1].astype(jnp.float32)
    return logits, value


# --------------------------- parameter construction ---------------------------

def _orthogonal(key, shape, gain):
    """Deterministic orthogonal init (matches nn.init.orthogonal_ semantics)."""
    rows, cols = shape
    flat = jax.random.normal(key, (max(rows, cols), min(rows, cols)), dtype=jnp.float32)
    q, r = jnp.linalg.qr(flat)
    sign = jnp.sign(jnp.diag(r))
    sign = jnp.where(sign == 0, 1.0, sign)   # robustness: never zero a column
    q = q * sign[None, :]
    if rows < cols:
        q = q.T
    return gain * q[:rows, :cols]


def make_params(key, obs_dim, action_dim, hidden_sizes=(256, 256, 128)):
    """'Raw' f32 parameters, weights already stored transposed as (in, out)."""
    ks = jax.random.split(key, 5)
    h1, h2, h3 = hidden_sizes
    sqrt2 = float(jnp.sqrt(2.0))

    def w(k, out_d, in_d, gain):
        # PyTorch Linear weight is (out, in); store transposed (in, out).
        return _orthogonal(k, (out_d, in_d), gain).T

    return {
        "w1": w(ks[0], h1, obs_dim, sqrt2), "b1": jnp.zeros((h1,), jnp.float32),
        "w2": w(ks[1], h2, h1, sqrt2),      "b2": jnp.zeros((h2,), jnp.float32),
        "w3": w(ks[2], h3, h2, sqrt2),      "b3": jnp.zeros((h3,), jnp.float32),
        "wa": w(ks[3], action_dim, h3, 0.01), "ba": jnp.zeros((action_dim,), jnp.float32),
        "wc": w(ks[4], 1, h3, sqrt2),         "bc": jnp.zeros((1,), jnp.float32),
    }


def prepare_params(raw, obs_dim, action_dim):
    """One-time kernel layout: K-pad w1 to the bf16 granule, fuse actor+critic into a single
    zero-padded 128-lane head, cast everything to bf16.  Run once at init, NOT per call."""
    h3 = raw["w3"].shape[1]
    k_pad = _round_up(obs_dim, SUBLANE_BF16)
    head_pad = _round_up(action_dim + 1, LANE)
    zpad = head_pad - action_dim - 1

    w1 = jnp.pad(raw["w1"], ((0, k_pad - obs_dim), (0, 0)))
    wh = jnp.concatenate(
        [raw["wa"], raw["wc"], jnp.zeros((h3, zpad), raw["wa"].dtype)], axis=1)
    bh = jnp.concatenate([raw["ba"], raw["bc"], jnp.zeros((zpad,), jnp.float32)], axis=0)

    bf = lambda a: a.astype(jnp.bfloat16)
    row = lambda a: bf(a).reshape(1, -1)
    return {
        "w1": bf(w1),        "b1": row(raw["b1"]),
        "w2": bf(raw["w2"]), "b2": row(raw["b2"]),
        "w3": bf(raw["w3"]), "b3": row(raw["b3"]),
        "wh": bf(wh),        "bh": row(bh),
    }


def _reference_forward(obs, prep, action_dim):
    """Pure-JAX reference mirroring the kernel's exact mixed-precision op sequence."""
    k_pad = prep["w1"].shape[0]
    x = jnp.pad(obs.astype(jnp.bfloat16), ((0, 0), (0, k_pad - obs.shape[1])))

    def layer(x, w, b):
        y = jnp.dot(x, w, preferred_element_type=jnp.float32).astype(jnp.bfloat16)
        return jnp.maximum(y + b, 0.0)

    h = layer(x, prep["w1"], prep["b1"])
    h = layer(h, prep["w2"], prep["b2"])
    h = layer(h, prep["w3"], prep["b3"])
    head = (jnp.dot(h, prep["wh"], preferred_element_type=jnp.float32)
            .astype(jnp.bfloat16) + prep["bh"])
    logits = head[:, :action_dim].astype(jnp.float32)
    value = head[:, action_dim:action_dim + 1].astype(jnp.float32)
    return logits, value


# ----------------------------------- main -------------------------------------

if __name__ == "__main__":
    B, OBS_DIM, ACTION_DIM = 8, 32, 8

    key = jax.random.PRNGKey(0)
    k_obs, k_params = jax.random.split(key)
    obs = jax.random.normal(k_obs, (B, OBS_DIM), dtype=jnp.float32)

    raw_params = make_params(k_params, OBS_DIM, ACTION_DIM)
    prep = prepare_params(raw_params, OBS_DIM, ACTION_DIM)   # one-time, outside the hot path

    fwd = jax.jit(functools.partial(actor_critic_forward, action_dim=ACTION_DIM))
    logits, value = fwd(obs, prep)
    jax.block_until_ready((logits, value))

    ref_logits, ref_value = _reference_forward(obs, prep, ACTION_DIM)
    assert logits.shape == (B, ACTION_DIM) and value.shape == (B, 1)
    # bf16-weight / bf16-activation path on both sides -> tight agreement expected.
    assert jnp.allclose(logits, ref_logits, atol=1e-2, rtol=1e-2)
    assert jnp.allclose(value, ref_value, atol=1e-2, rtol=1e-2)

    print("KERNEL_OK")
</pallas_src>

<mosaic_0001>
module attributes {stable_mosaic.version = 11 : i64} {
  func.func @_actor_critic_kernel(%arg0: i32, %arg1: memref<16x32xbf16, #tpu.memory_space<vmem>>, %arg2: memref<32x256xbf16, #tpu.memory_space<vmem>>, %arg3: memref<1x256xbf16, #tpu.memory_space<vmem>>, %arg4: memref<256x256xbf16, #tpu.memory_space<vmem>>, %arg5: memref<1x256xbf16, #tpu.memory_space<vmem>>, %arg6: memref<256x128xbf16, #tpu.memory_space<vmem>>, %arg7: memref<1x128xbf16, #tpu.memory_space<vmem>>, %arg8: memref<128x128xbf16, #tpu.memory_space<vmem>>, %arg9: memref<1x128xbf16, #tpu.memory_space<vmem>>, %arg10: memref<16x128xbf16, #tpu.memory_space<vmem>>) attributes {dimension_semantics = [#tpu.dimension_semantics<parallel>], iteration_bounds = array<i64: 1>, scalar_prefetch = 0 : i64, scratch_operands = 0 : i64, tpu.core_type = #tpu.core_type<tc>, window_params = [{transform_indices = @transform_0, window_bounds = array<i64: 16, 32>}, {pipeline_mode = #tpu.pipeline_mode<synchronous>, transform_indices = @transform_1, window_bounds = array<i64: 32, 256>}, {pipeline_mode = #tpu.pipeline_mode<synchronous>, transform_indices = @transform_2, window_bounds = array<i64: 1, 256>}, {pipeline_mode = #tpu.pipeline_mode<synchronous>, transform_indices = @transform_3, window_bounds = array<i64: 256, 256>}, {pipeline_mode = #tpu.pipeline_mode<synchronous>, transform_indices = @transform_4, window_bounds = array<i64: 1, 256>}, {pipeline_mode = #tpu.pipeline_mode<synchronous>, transform_indices = @transform_5, window_bounds = array<i64: 256, 128>}, {pipeline_mode = #tpu.pipeline_mode<synchronous>, transform_indices = @transform_6, window_bounds = array<i64: 1, 128>}, {pipeline_mode = #tpu.pipeline_mode<synchronous>, transform_indices = @transform_7, window_bounds = array<i64: 128, 128>}, {pipeline_mode = #tpu.pipeline_mode<synchronous>, transform_indices = @transform_8, window_bounds = array<i64: 1, 128>}, {transform_indices = @transform_9, window_bounds = array<i64: 16, 128>}]} {
    %c0 = arith.constant 0 : index
    %c0_0 = arith.constant 0 : index
    %0 = vector.load %arg1[%c0, %c0_0] : memref<16x32xbf16, #tpu.memory_space<vmem>>, vector<16x32xbf16>
    %c0_1 = arith.constant 0 : index
    %c0_2 = arith.constant 0 : index
    %1 = vector.load %arg2[%c0_1, %c0_2] : memref<32x256xbf16, #tpu.memory_space<vmem>>, vector<32x256xbf16>
    %cst = arith.constant dense<0.000000e+00> : vector<16x256xf32>
    %2 = tpu.matmul %0, %1, %cst {dimension_numbers = #tpu.dot_dimension_numbers<[1], [0], [0], [1], [0, 0, 1, 1], [], []>} : vector<16x32xbf16>, vector<32x256xbf16>, vector<16x256xf32> -> vector<16x256xf32>
    %3 = arith.truncf %2 : vector<16x256xf32> to vector<16x256xbf16>
    %c0_3 = arith.constant 0 : index
    %c0_4 = arith.constant 0 : index
    %4 = vector.load %arg3[%c0_3, %c0_4] : memref<1x256xbf16, #tpu.memory_space<vmem>>, vector<1x256xbf16>
    %5 = vector.broadcast %4 : vector<1x256xbf16> to vector<16x256xbf16>
    %6 = arith.addf %3, %5 : vector<16x256xbf16>
    %cst_5 = arith.constant 0.000000e+00 : bf16
    %7 = vector.broadcast %cst_5 : bf16 to vector<16x256xbf16>
    %8 = arith.maximumf %6, %7 : vector<16x256xbf16>
    %c0_6 = arith.constant 0 : index
    %c0_7 = arith.constant 0 : index
    %9 = vector.load %arg4[%c0_6, %c0_7] : memref<256x256xbf16, #tpu.memory_space<vmem>>, vector<256x256xbf16>
    %cst_8 = arith.constant dense<0.000000e+00> : vector<16x256xf32>
    %10 = tpu.matmul %8, %9, %cst_8 {dimension_numbers = #tpu.dot_dimension_numbers<[1], [0], [0], [1], [0, 0, 1, 1], [], []>} : vector<16x256xbf16>, vector<256x256xbf16>, vector<16x256xf32> -> vector<16x256xf32>
    %11 = arith.truncf %10 : vector<16x256xf32> to vector<16x256xbf16>
    %c0_9 = arith.constant 0 : index
    %c0_10 = arith.constant 0 : index
    %12 = vector.load %arg5[%c0_9, %c0_10] : memref<1x256xbf16, #tpu.memory_space<vmem>>, vector<1x256xbf16>
    %13 = vector.broadcast %12 : vector<1x256xbf16> to vector<16x256xbf16>
    %14 = arith.addf %11, %13 : vector<16x256xbf16>
    %cst_11 = arith.constant 0.000000e+00 : bf16
    %15 = vector.broadcast %cst_11 : bf16 to vector<16x256xbf16>
    %16 = arith.maximumf %14, %15 : vector<16x256xbf16>
    %c0_12 = arith.constant 0 : index
    %c0_13 = arith.constant 0 : index
    %17 = vector.load %arg6[%c0_12, %c0_13] : memref<256x128xbf16, #tpu.memory_space<vmem>>, vector<256x128xbf16>
    %cst_14 = arith.constant dense<0.000000e+00> : vector<16x128xf32>
    %18 = tpu.matmul %16, %17, %cst_14 {dimension_numbers = #tpu.dot_dimension_numbers<[1], [0], [0], [1], [0, 0, 1, 1], [], []>} : vector<16x256xbf16>, vector<256x128xbf16>, vector<16x128xf32> -> vector<16x128xf32>
    %19 = arith.truncf %18 : vector<16x128xf32> to vector<16x128xbf16>
    %c0_15 = arith.constant 0 : index
    %c0_16 = arith.constant 0 : index
    %20 = vector.load %arg7[%c0_15, %c0_16] : memref<1x128xbf16, #tpu.memory_space<vmem>>, vector<1x128xbf16>
    %21 = vector.broadcast %20 : vector<1x128xbf16> to vector<16x128xbf16>
    %22 = arith.addf %19, %21 : vector<16x128xbf16>
    %cst_17 = arith.constant 0.000000e+00 : bf16
    %23 = vector.broadcast %cst_17 : bf16 to vector<16x128xbf16>
    %24 = arith.maximumf %22, %23 : vector<16x128xbf16>
    %c0_18 = arith.constant 0 : index
    %c0_19 = arith.constant 0 : index
    %25 = vector.load %arg8[%c0_18, %c0_19] : memref<128x128xbf16, #tpu.memory_space<vmem>>, vector<128x128xbf16>
    %cst_20 = arith.constant dense<0.000000e+00> : vector<16x128xf32>
    %26 = tpu.matmul %24, %25, %cst_20 {dimension_numbers = #tpu.dot_dimension_numbers<[1], [0], [0], [1], [0, 0, 1, 1], [], []>} : vector<16x128xbf16>, vector<128x128xbf16>, vector<16x128xf32> -> vector<16x128xf32>
    %27 = arith.truncf %26 : vector<16x128xf32> to vector<16x128xbf16>
    %c0_21 = arith.constant 0 : index
    %c0_22 = arith.constant 0 : index
    %28 = vector.load %arg9[%c0_21, %c0_22] : memref<1x128xbf16, #tpu.memory_space<vmem>>, vector<1x128xbf16>
    %29 = vector.broadcast %28 : vector<1x128xbf16> to vector<16x128xbf16>
    %30 = arith.addf %27, %29 : vector<16x128xbf16>
    %c0_23 = arith.constant 0 : index
    %c0_24 = arith.constant 0 : index
    %31 = vector.load %arg10[%c0_23, %c0_24] : memref<16x128xbf16, #tpu.memory_space<vmem>>, vector<16x128xbf16>
    tpu.vector_store %arg10[%c0_23, %c0_24], %30 {strides = array<i32>} : memref<16x128xbf16, #tpu.memory_space<vmem>>, vector<16x128xbf16>,
    return
  }
  func.func @transform_0(%arg0: i32) -> (i32, i32) {
    %c0_i32 = arith.constant 0 : i32
    %c0_i32_0 = arith.constant 0 : i32
    return %arg0, %c0_i32 : i32, i32
  }
  func.func @transform_1(%arg0: i32) -> (i32, i32) {
    %c0_i32 = arith.constant 0 : i32
    %c0_i32_0 = arith.constant 0 : i32
    %c0_i32_1 = arith.constant 0 : i32
    return %c0_i32, %c0_i32_0 : i32, i32
  }
  func.func @transform_2(%arg0: i32) -> (i32, i32) {
    %c0_i32 = arith.constant 0 : i32
    %c0_i32_0 = arith.constant 0 : i32
    %c0_i32_1 = arith.constant 0 : i32
    return %c0_i32, %c0_i32_0 : i32, i32
  }
  func.func @transform_3(%arg0: i32) -> (i32, i32) {
    %c0_i32 = arith.constant 0 : i32
    %c0_i32_0 = arith.constant 0 : i32
    %c0_i32_1 = arith.constant 0 : i32
    return %c0_i32, %c0_i32_0 : i32, i32
  }
  func.func @transform_4(%arg0: i32) -> (i32, i32) {
    %c0_i32 = arith.constant 0 : i32
    %c0_i32_0 = arith.constant 0 : i32
    %c0_i32_1 = arith.constant 0 : i32
    return %c0_i32, %c0_i32_0 : i32, i32
  }
  func.func @transform_5(%arg0: i32) -> (i32, i32) {
    %c0_i32 = arith.constant 0 : i32
    %c0_i32_0 = arith.constant 0 : i32
    %c0_i32_1 = arith.constant 0 : i32
    return %c0_i32, %c0_i32_0 : i32, i32
  }
  func.func @transform_6(%arg0: i32) -> (i32, i32) {
    %c0_i32 = arith.constant 0 : i32
    %c0_i32_0 = arith.constant 0 : i32
    %c0_i32_1 = arith.constant 0 : i32
    return %c0_i32, %c0_i32_0 : i32, i32
  }
  func.func @transform_7(%arg0: i32) -> (i32, i32) {
    %c0_i32 = arith.constant 0 : i32
    %c0_i32_0 = arith.constant 0 : i32
    %c0_i32_1 = arith.constant 0 : i32
    return %c0_i32, %c0_i32_0 : i32, i32
  }
  func.func @transform_8(%arg0: i32) -> (i32, i32) {
    %c0_i32 = arith.constant 0 : i32
    %c0_i32_0 = arith.constant 0 : i32
    %c0_i32_1 = arith.constant 0 : i32
    return %c0_i32, %c0_i32_0 : i32, i32
  }
  func.func @transform_9(%arg0: i32) -> (i32, i32) {
    %c0_i32 = arith.constant 0 : i32
    %c0_i32_0 = arith.constant 0 : i32
    return %arg0, %c0_i32 : i32, i32
  }
}

</mosaic_0001>

<llo_original>
// kernel: actor_critic_forward.1
$region0: #{actor_critic_forward.1}
  #allocation0 [shape = 'u32[]', space=smem, size = 0x4, offset = 0x4, fixed_abs, tag = 'smem constant byte address 0x4 - core index']
  #allocation1 [shape = 'u32[72,128]{1,0:T(1,128)}', space=vmem, size = 0x9000, scoped, tag = 'internal scratch']
  %s0 = inlined_call_operand.vmem [shape: bf16[16,32], index: 0, kind: input, shape index: {}]
  %s1 = inlined_call_operand.hbm [shape: bf16[32,256], index: 1, kind: input, shape index: {}]
  %s2 = inlined_call_operand.vmem [shape: bf16[1,256], index: 2, kind: input, shape index: {}]
  %s3 = inlined_call_operand.hbm [shape: bf16[256,256], index: 3, kind: input, shape index: {}]
  %s4 = inlined_call_operand.vmem [shape: bf16[1,256], index: 4, kind: input, shape index: {}]
  %s5 = inlined_call_operand.hbm [shape: bf16[256,128], index: 5, kind: input, shape index: {}]
  %s6 = inlined_call_operand.vmem [shape: bf16[1,128], index: 6, kind: input, shape index: {}]
  %s7 = inlined_call_operand.hbm [shape: bf16[128,128], index: 7, kind: input, shape index: {}]
  %s8 = inlined_call_operand.vmem [shape: bf16[1,128], index: 8, kind: input, shape index: {}]
  %s9 = inlined_call_operand.vmem [shape: bf16[16,128], index: 9, kind: output, shape index: {}]
  %s10 = sld [smem:[#allocation0]]
  $region62: #{actor_critic_forward.1} parent=0
    _
  %s12 = ssub.s32 1, %s10
  %s13 = scalar_select 0, %s12, %s10
  $region1: #{actor_critic_forward.1} parent=0
    #allocation2 [shape = 'u8[16384]{0}', space=vmem, size = 0x4000, scoped, tag = 'input window, operand 1, single buffered']
    #allocation3 [shape = 's32[1]{0}', space=sflag, size = 0x4, scoped, tag = 'scoped memory for actor_critic_forward.1']
    #allocation4 [shape = 'u8[131072]{0}', space=vmem, size = 0x20000, scoped, tag = 'input window, operand 3, single buffered']
    #allocation5 [shape = 's32[1]{0}', space=sflag, size = 0x4, scoped, tag = 'scoped memory for actor_critic_forward.1']
    #allocation6 [shape = 'u8[65536]{0}', space=vmem, size = 0x10000, scoped, tag = 'input window, operand 5, single buffered']
    #allocation7 [shape = 'u8[32768]{0}', space=vmem, size = 0x8000, scoped, tag = 'input window, operand 7, single buffered']
    #allocation8 [shape = 's32[1]{0}', space=sflag, size = 0x4, scoped, tag = 'scoped memory for actor_critic_forward.1']
    %14 = vsyncpa [#allocation3], 0
    %15 = vsyncpa [#allocation5], 0
    %16 = vsyncpa [#allocation8], 0
    // Predicated region
    $region2: #{actor_critic_forward.1} parent=1 // pred_check
      _
    $region3: #{actor_critic_forward.1} parent=1 // pred_check_branch
      %18 = sbr.rel (0) target = $region5
    $region4: #{actor_critic_forward.1} parent=1 // pred_region
      _
    $region5: #{actor_critic_forward.1} parent=1 // pred_fallthru
      _
    // Predicated region
    $region6: #{actor_critic_forward.1} parent=1 // pred_check
      _
    $region7: #{actor_critic_forward.1} parent=1 // pred_check_branch
      %20 = sbr.rel (0) target = $region9
    $region8: #{actor_critic_forward.1} parent=1 // pred_region
      %22 = vsyncadd [#allocation3], 0
      %s23 = sshll.u32 %s1, 4
      %s24 = int_to_ptr.hbm [resolvable:$true] %s23
      %s25 = sshll.u32 [#allocation2], 4
      %s26 = int_to_ptr.vmem [resolvable:$true] %s25
      %31 = dma.hbm_to_vmem [thread:$0]  %s24, 512, %s26, [#allocation3], 128, 128, 8
    $region9: #{actor_critic_forward.1} parent=1 // pred_fallthru
      _
    // Predicated region
    $region10: #{actor_critic_forward.1} parent=1 // pred_check
      _
    $region11: #{actor_critic_forward.1} parent=1 // pred_check_branch
      %33 = sbr.rel (0) target = $region13
    $region12: #{actor_critic_forward.1} parent=1 // pred_region
      _
    $region13: #{actor_critic_forward.1} parent=1 // pred_fallthru
      _
    // Predicated region
    $region14: #{actor_critic_forward.1} parent=1 // pred_check
      _
    $region15: #{actor_critic_forward.1} parent=1 // pred_check_branch
      %35 = sbr.rel (0) target = $region17
    $region16: #{actor_critic_forward.1} parent=1 // pred_region
      %37 = vsyncadd [#allocation5], 0
      %s38 = sshll.u32 %s3, 4
      %s39 = int_to_ptr.hbm [resolvable:$true] %s38
      %s40 = sshll.u32 [#allocation4], 4
      %s41 = int_to_ptr.vmem [resolvable:$true] %s40
      %46 = dma.hbm_to_vmem [thread:$0]  %s39, 4096, %s41, [#allocation5], 128, 128, 8
    $region17: #{actor_critic_forward.1} parent=1 // pred_fallthru
      _
    // Predicated region
    $region18: #{actor_critic_forward.1} parent=1 // pred_check
      _
    $region19: #{actor_critic_forward.1} parent=1 // pred_check_branch
      %48 = sbr.rel (0) target = $region21
    $region20: #{actor_critic_forward.1} parent=1 // pred_region
      _
    $region21: #{actor_critic_forward.1} parent=1 // pred_fallthru
      _
    // Predicated region
    $region22: #{actor_critic_forward.1} parent=1 // pred_check
      _
    $region23: #{actor_critic_forward.1} parent=1 // pred_check_branch
      %50 = sbr.rel (0) target = $region25
    $region24: #{actor_critic_forward.1} parent=1 // pred_region
      %52 = vsyncadd [#allocation5], 0
      %s53 = sshll.u32 %s5, 4
      %s54 = int_to_ptr.hbm [resolvable:$true] %s53
      %s55 = sshll.u32 [#allocation6], 4
      %s56 = int_to_ptr.vmem [resolvable:$true] %s55
      %61 = dma.hbm_to_vmem [thread:$0]  %s54, 2048, %s56, [#allocation5], 64, 64, 4
    $region25: #{actor_critic_forward.1} parent=1 // pred_fallthru
      _
    // Predicated region
    $region26: #{actor_critic_forward.1} parent=1 // pred_check
      _
    $region27: #{actor_critic_forward.1} parent=1 // pred_check_branch
      %63 = sbr.rel (0) target = $region29
    $region28: #{actor_critic_forward.1} parent=1 // pred_region
      _
    $region29: #{actor_critic_forward.1} parent=1 // pred_fallthru
      _
    // Predicated region
    $region30: #{actor_critic_forward.1} parent=1 // pred_check
      _
    $region31: #{actor_critic_forward.1} parent=1 // pred_check_branch
      %65 = sbr.rel (0) target = $region33
    $region32: #{actor_critic_forward.1} parent=1 // pred_region
      %67 = vsyncadd [#allocation8], 0
      %s68 = sshll.u32 %s7, 4
      %s69 = int_to_ptr.hbm [resolvable:$true] %s68
      %s70 = sshll.u32 [#allocation7], 4
      %s71 = int_to_ptr.vmem [resolvable:$true] %s70
      %76 = dma.hbm_to_vmem [thread:$0]  %s69, 1024, %s71, [#allocation8], 64, 64, 4
    $region33: #{actor_critic_forward.1} parent=1 // pred_fallthru
      _
    // Predicated region
    $region34: #{actor_critic_forward.1} parent=1 // pred_check
      _
    $region35: #{actor_critic_forward.1} parent=1 // pred_check_branch
      %78 = sbr.rel (0) target = $region37
    $region36: #{actor_critic_forward.1} parent=1 // pred_region
      _
    $region37: #{actor_critic_forward.1} parent=1 // pred_fallthru
      _
    // Predicated region
    $region38: #{actor_critic_forward.1} parent=1 // pred_check
      _
    $region39: #{actor_critic_forward.1} parent=1 // pred_check_branch
      %80 = sbr.rel (0) target = $region41
    $region40: #{actor_critic_forward.1} parent=1 // pred_region
      %82 = dma.done [#allocation3], 512
    $region41: #{actor_critic_forward.1} parent=1 // pred_fallthru
      _
    // Predicated region
    $region42: #{actor_critic_forward.1} parent=1 // pred_check
      _
    $region43: #{actor_critic_forward.1} parent=1 // pred_check_branch
      %84 = sbr.rel (0) target = $region45
    $region44: #{actor_critic_forward.1} parent=1 // pred_region
      %86 = dma.done [#allocation5], 4096
    $region45: #{actor_critic_forward.1} parent=1 // pred_fallthru
      _
    // Predicated region
    $region46: #{actor_critic_forward.1} parent=1 // pred_check
      _
    $region47: #{actor_critic_forward.1} parent=1 // pred_check_branch
      %88 = sbr.rel (0) target = $region49
    $region48: #{actor_critic_forward.1} parent=1 // pred_region
      %90 = dma.done [#allocation5], 2048
    $region49: #{actor_critic_forward.1} parent=1 // pred_fallthru
      _
    // Predicated region
    $region50: #{actor_critic_forward.1} parent=1 // pred_check
      _
    $region51: #{actor_critic_forward.1} parent=1 // pred_check_branch
      %92 = sbr.rel (0) target = $region53
    $region52: #{actor_critic_forward.1} parent=1 // pred_region
      %94 = dma.done [#allocation8], 1024
    $region53: #{actor_critic_forward.1} parent=1 // pred_fallthru
      _
    %v96 = vld [vmem:[%s0] sm:$0xf]
    %v97 = vld [vmem:[%s0 + $0x4] sm:$0xf]
    %v98 = vld [vmem:[#allocation2] sm:$0xff]
    %v99 = vld [vmem:[#allocation2 + $0x8] sm:$0xff]
    %v100 = vld [vmem:[#allocation2 + $0x10] sm:$0xff]
    %v101 = vld [vmem:[#allocation2 + $0x18] sm:$0xff]
    %v104 = vunpack.c.l.b16 %v96
    %v105 = vunpack.c.l.b16 %v97
    %v106 = vpack.c.b16 %v105, %v104
    %v111 = vunpack.c.l.b16 %v98
    %v112 = vunpack.c.h.b16 %v98
    %v113 = vunpack.c.l.b16 %v99
    %v114 = vunpack.c.h.b16 %v99
    %v115 = vunpack.c.l.b16 %v100
    %v116 = vunpack.c.h.b16 %v100
    %v117 = vunpack.c.l.b16 %v101
    %v118 = vunpack.c.h.b16 %v101
    %v119 = vpack.c.b16 %v113, %v111
    %v120 = vpack.c.b16 %v114, %v112
    %v121 = vpack.c.b16 %v117, %v115
    %v122 = vpack.c.b16 %v118, %v116
    %vm127 = vcmask 261120
    %v129 = vsel %vm127, %v106, 0
    %131 = vmatpush.bf16.msra.mxu0 0
    %132 = vmatpush.bf16.msra.mxu0 0
    %133 = vmatpush.bf16.msra.mxu0 0
    %134 = vmatpush.bf16.msra.mxu0 0
    %135 = vmatpush.bf16.msra.mxu0 0
    %136 = vmatpush.bf16.msra.mxu0 0
    %137 = vmatpush.bf16.msra.mxu0 %v121
    %138 = vmatpush.bf16.msra.mxu0 %v119
    %139 = vmatmul.bf16.gmra.mxu0 %v129
    %v140 = vpop.f32.mrf.mxu0
    %v141 = vadd.f32 0.0, %v140
    %v142 = vpop.f32.mrf.mxu0
    %v143 = vadd.f32 0.0, %v142
    %144 = vdwg.mxu0
    %145 = vmatpush.bf16.msra.mxu0 0
    %146 = vmatpush.bf16.msra.mxu0 0
    %147 = vmatpush.bf16.msra.mxu0 0
    %148 = vmatpush.bf16.msra.mxu0 0
    %149 = vmatpush.bf16.msra.mxu0 0
    %150 = vmatpush.bf16.msra.mxu0 0
    %151 = vmatpush.bf16.msra.mxu0 %v122
    %152 = vmatpush.bf16.msra.mxu0 %v120
    %153 = vmatmul.bf16.gmra.mxu0 %v129
    %v154 = vpop.f32.mrf.mxu0
    %v155 = vadd.f32 0.0, %v154
    %v156 = vpop.f32.mrf.mxu0
    %v157 = vadd.f32 0.0, %v156
    %158 = vdwg.mxu0
    %v159 = vpack.c.bf16 %v155, %v141
    %v160 = vpack.c.bf16 %v157, %v143
    %v161 = vld [vmem:[%s2] sm:$0x3]
    %163 = vst [vmem:[#allocation1] ss:$9 sm:$0xff] %v161
    %v164 = vld [vmem:[#allocation1] sm:$0xff]
    %v165 = vld [vmem:[#allocation1 + $0x9] sm:$0xff]
    %v166 = vpack.i.b16 %v164, %v164
    %v168 = vperm.slane %v166, 0
    %v169 = vpack.i.b16 %v165, %v165
    %v171 = vperm.slane %v169, 0
    %v172 = vunpack.c.l.bf16 %v159
    %v173 = vunpack.c.h.bf16 %v159
    %v174 = vunpack.c.l.bf16 %v160
    %v175 = vunpack.c.h.bf16 %v160
    %v176 = vunpack.c.l.bf16 %v168
    %v177 = vunpack.c.l.bf16 %v171
    %v178 = vadd.f32 %v172, %v176
    %v179 = vadd.f32 %v173, %v177
    %v180 = vadd.f32 %v174, %v176
    %v181 = vadd.f32 %v175, %v177
    %v182 = vpack.c.bf16 %v179, %v178
    %v183 = vpack.c.bf16 %v181, %v180
    %v184 = vunpack.c.l.bf16 %v182
    %v185 = vunpack.c.h.bf16 %v182
    %v186 = vunpack.c.l.bf16 %v183
    %v187 = vunpack.c.h.bf16 %v183
    %v188 = vmax.f32 %v184, 0.0
    %v189 = vmax.f32 %v185, 0.0
    %v190 = vmax.f32 %v186, 0.0
    %v191 = vmax.f32 %v187, 0.0
    %v192 = vpack.c.bf16 %v190, %v188
    %v193 = vpack.c.bf16 %v191, %v189
    %v194 = vld [vmem:[#allocation4] sm:$0xff]
    %v195 = vld [vmem:[#allocation4 + $0x8] sm:$0xff]
    %v196 = vld [vmem:[#allocation4 + $0x10] sm:$0xff]
    %v197 = vld [vmem:[#allocation4 + $0x18] sm:$0xff]
    %v198 = vld [vmem:[#allocation4 + $0x20] sm:$0xff]
    %v199 = vld [vmem:[#allocation4 + $0x28] sm:$0xff]
    %v200 = vld [vmem:[#allocation4 + $0x30] sm:$0xff]
    %v201 = vld [vmem:[#allocation4 + $0x38] sm:$0xff]
    %v202 = vld [vmem:[#allocation4 + $0x40] sm:$0xff]
    %v203 = vld [vmem:[#allocation4 + $0x48] sm:$0xff]
    %v204 = vld [vmem:[#allocation4 + $0x50] sm:$0xff]
    %v205 = vld [vmem:[#allocation4 + $0x58] sm:$0xff]
    %v206 = vld [vmem:[#allocation4 + $0x60] sm:$0xff]
    %v207 = vld [vmem:[#allocation4 + $0x68] sm:$0xff]
    %v208 = vld [vmem:[#allocation4 + $0x70] sm:$0xff]
    %v209 = vld [vmem:[#allocation4 + $0x78] sm:$0xff]
    %v210 = vld [vmem:[#allocation4 + $0x80] sm:$0xff]
    %v211 = vld [vmem:[#allocation4 + $0x88] sm:$0xff]
    %v212 = vld [vmem:[#allocation4 + $0x90] sm:$0xff]
    %v213 = vld [vmem:[#allocation4 + $0x98] sm:$0xff]
    %v214 = vld [vmem:[#allocation4 + $0xa0] sm:$0xff]
    %v215 = vld [vmem:[#allocation4 + $0xa8] sm:$0xff]
    %v216 = vld [vmem:[#allocation4 + $0xb0] sm:$0xff]
    %v217 = vld [vmem:[#allocation4 + $0xb8] sm:$0xff]
    %v218 = vld [vmem:[#allocation4 + $0xc0] sm:$0xff]
    %v219 = vld [vmem:[#allocation4 + $0xc8] sm:$0xff]
    %v220 = vld [vmem:[#allocation4 + $0xd0] sm:$0xff]
    %v221 = vld [vmem:[#allocation4 + $0xd8] sm:$0xff]
    %v222 = vld [vmem:[#allocation4 + $0xe0] sm:$0xff]
    %v223 = vld [vmem:[#allocation4 + $0xe8] sm:$0xff]
    %v224 = vld [vmem:[#allocation4 + $0xf0] sm:$0xff]
    %v225 = vld [vmem:[#allocation4 + $0xf8] sm:$0xff]
    %v258 = vunpack.c.l.b16 %v194
    %v259 = vunpack.c.h.b16 %v194
    %v260 = vunpack.c.l.b16 %v195
    %v261 = vunpack.c.h.b16 %v195
    %v262 = vunpack.c.l.b16 %v196
    %v263 = vunpack.c.h.b16 %v196
    %v264 = vunpack.c.l.b16 %v197
    %v265 = vunpack.c.h.b16 %v197
    %v266 = vunpack.c.l.b16 %v198
    %v267 = vunpack.c.h.b16 %v198
    %v268 = vunpack.c.l.b16 %v199
    %v269 = vunpack.c.h.b16 %v199
    %v270 = vunpack.c.l.b16 %v200
    %v271 = vunpack.c.h.b16 %v200
    %v272 = vunpack.c.l.b16 %v201
    %v273 = vunpack.c.h.b16 %v201
    %v274 = vunpack.c.l.b16 %v202
    %v275 = vunpack.c.h.b16 %v202
    %v276 = vunpack.c.l.b16 %v203
    %v277 = vunpack.c.h.b16 %v203
    %v278 = vunpack.c.l.b16 %v204
    %v279 = vunpack.c.h.b16 %v204
    %v280 = vunpack.c.l.b16 %v205
    %v281 = vunpack.c.h.b16 %v205
    %v282 = vunpack.c.l.b16 %v206
    %v283 = vunpack.c.h.b16 %v206
    %v284 = vunpack.c.l.b16 %v207
    %v285 = vunpack.c.h.b16 %v207
    %v286 = vunpack.c.l.b16 %v208
    %v287 = vunpack.c.h.b16 %v208
    %v288 = vunpack.c.l.b16 %v209
    %v289 = vunpack.c.h.b16 %v209
    %v290 = vunpack.c.l.b16 %v210
    %v291 = vunpack.c.h.b16 %v210
    %v292 = vunpack.c.l.b16 %v211
    %v293 = vunpack.c.h.b16 %v211
    %v294 = vunpack.c.l.b16 %v212
    %v295 = vunpack.c.h.b16 %v212
    %v296 = vunpack.c.l.b16 %v213
    %v297 = vunpack.c.h.b16 %v213
    %v298 = vunpack.c.l.b16 %v214
    %v299 = vunpack.c.h.b16 %v214
    %v300 = vunpack.c.l.b16 %v215
    %v301 = vunpack.c.h.b16 %v215
    %v302 = vunpack.c.l.b16 %v216
    %v303 = vunpack.c.h.b16 %v216
    %v304 = vunpack.c.l.b16 %v217
    %v305 = vunpack.c.h.b16 %v217
    %v306 = vunpack.c.l.b16 %v218
    %v307 = vunpack.c.h.b16 %v218
    %v308 = vunpack.c.l.b16 %v219
    %v309 = vunpack.c.h.b16 %v219
    %v310 = vunpack.c.l.b16 %v220
    %v311 = vunpack.c.h.b16 %v220
    %v312 = vunpack.c.l.b16 %v221
    %v313 = vunpack.c.h.b16 %v221
    %v314 = vunpack.c.l.b16 %v222
    %v315 = vunpack.c.h.b16 %v222
    %v316 = vunpack.c.l.b16 %v223
    %v317 = vunpack.c.h.b16 %v223
    %v318 = vunpack.c.l.b16 %v224
    %v319 = vunpack.c.h.b16 %v224
    %v320 = vunpack.c.l.b16 %v225
    %v321 = vunpack.c.h.b16 %v225
    %v322 = vpack.c.b16 %v260, %v258
    %v323 = vpack.c.b16 %v261, %v259
    %v324 = vpack.c.b16 %v264, %v262
    %v325 = vpack.c.b16 %v265, %v263
    %v326 = vpack.c.b16 %v268, %v266
    %v327 = vpack.c.b16 %v269, %v267
    %v328 = vpack.c.b16 %v272, %v270
    %v329 = vpack.c.b16 %v273, %v271
    %v330 = vpack.c.b16 %v276, %v274
    %v331 = vpack.c.b16 %v277, %v275
    %v332 = vpack.c.b16 %v280, %v278
    %v333 = vpack.c.b16 %v281, %v279
    %v334 = vpack.c.b16 %v284, %v282
    %v335 = vpack.c.b16 %v285, %v283
    %v336 = vpack.c.b16 %v288, %v286
    %v337 = vpack.c.b16 %v289, %v287
    %v338 = vpack.c.b16 %v292, %v290
    %v339 = vpack.c.b16 %v293, %v291
    %v340 = vpack.c.b16 %v296, %v294
    %v341 = vpack.c.b16 %v297, %v295
    %v342 = vpack.c.b16 %v300, %v298
    %v343 = vpack.c.b16 %v301, %v299
    %v344 = vpack.c.b16 %v304, %v302
    %v345 = vpack.c.b16 %v305, %v303
    %v346 = vpack.c.b16 %v308, %v306
    %v347 = vpack.c.b16 %v309, %v307
    %v348 = vpack.c.b16 %v312, %v310
    %v349 = vpack.c.b16 %v313, %v311
    %v350 = vpack.c.b16 %v316, %v314
    %v351 = vpack.c.b16 %v317, %v315
    %v352 = vpack.c.b16 %v320, %v318
    %v353 = vpack.c.b16 %v321, %v319
    %386 = vmatpush.bf16.msra.mxu0 %v336
    %387 = vmatpush.bf16.msra.mxu0 %v334
    %388 = vmatpush.bf16.msra.mxu0 %v332
    %389 = vmatpush.bf16.msra.mxu0 %v330
    %390 = vmatpush.bf16.msra.mxu0 %v328
    %391 = vmatpush.bf16.msra.mxu0 %v326
    %392 = vmatpush.bf16.msra.mxu0 %v324
    %393 = vmatpush.bf16.msra.mxu0 %v322
    %394 = vmatmul.bf16.gmra.mxu0 %v192
    %v395 = vpop.f32.mrf.mxu0
    %v396 = vadd.f32 0.0, %v395
    %v397 = vpop.f32.mrf.mxu0
    %v398 = vadd.f32 0.0, %v397
    %399 = vdwg.mxu0
    %400 = vmatpush.bf16.msra.mxu0 %v352
    %401 = vmatpush.bf16.msra.mxu0 %v350
    %402 = vmatpush.bf16.msra.mxu0 %v348
    %403 = vmatpush.bf16.msra.mxu0 %v346
    %404 = vmatpush.bf16.msra.mxu0 %v344
    %405 = vmatpush.bf16.msra.mxu0 %v342
    %406 = vmatpush.bf16.msra.mxu0 %v340
    %407 = vmatpush.bf16.msra.mxu0 %v338
    %408 = vmatmul.bf16.gmra.mxu0 %v193
    %v409 = vpop.f32.mrf.mxu0
    %v410 = vadd.f32 %v396, %v409
    %v411 = vpop.f32.mrf.mxu0
    %v412 = vadd.f32 %v398, %v411
    %413 = vdwg.mxu0
    %414 = vmatpush.bf16.msra.mxu0 %v337
    %415 = vmatpush.bf16.msra.mxu0 %v335
    %416 = vmatpush.bf16.msra.mxu0 %v333
    %417 = vmatpush.bf16.msra.mxu0 %v331
    %418 = vmatpush.bf16.msra.mxu0 %v329
    %419 = vmatpush.bf16.msra.mxu0 %v327
    %420 = vmatpush.bf16.msra.mxu0 %v325
    %421 = vmatpush.bf16.msra.mxu0 %v323
    %422 = vmatmul.bf16.gmra.mxu0 %v192
    %v423 = vpop.f32.mrf.mxu0
    %v424 = vadd.f32 0.0, %v423
    %v425 = vpop.f32.mrf.mxu0
    %v426 = vadd.f32 0.0, %v425
    %427 = vdwg.mxu0
    %428 = vmatpush.bf16.msra.mxu0 %v353
    %429 = vmatpush.bf16.msra.mxu0 %v351
    %430 = vmatpush.bf16.msra.mxu0 %v349
    %431 = vmatpush.bf16.msra.mxu0 %v347
    %432 = vmatpush.bf16.msra.mxu0 %v345
    %433 = vmatpush.bf16.msra.mxu0 %v343
    %434 = vmatpush.bf16.msra.mxu0 %v341
    %435 = vmatpush.bf16.msra.mxu0 %v339
    %436 = vmatmul.bf16.gmra.mxu0 %v193
    %v437 = vpop.f32.mrf.mxu0
    %v438 = vadd.f32 %v424, %v437
    %v439 = vpop.f32.mrf.mxu0
    %v440 = vadd.f32 %v426, %v439
    %441 = vdwg.mxu0
    %v442 = vpack.c.bf16 %v438, %v410
    %v443 = vpack.c.bf16 %v440, %v412
    %v444 = vld [vmem:[%s4] sm:$0x3]
    %446 = vst [vmem:[#allocation1] ss:$9 sm:$0xff] %v444
    %v447 = vld [vmem:[#allocation1] sm:$0xff]
    %v448 = vld [vmem:[#allocation1 + $0x9] sm:$0xff]
    %v449 = vpack.i.b16 %v447, %v447
    %v451 = vperm.slane %v449, 0
    %v452 = vpack.i.b16 %v448, %v448
    %v454 = vperm.slane %v452, 0
    %v455 = vunpack.c.l.bf16 %v442
    %v456 = vunpack.c.h.bf16 %v442
    %v457 = vunpack.c.l.bf16 %v443
    %v458 = vunpack.c.h.bf16 %v443
    %v459 = vunpack.c.l.bf16 %v451
    %v460 = vunpack.c.l.bf16 %v454
    %v461 = vadd.f32 %v455, %v459
    %v462 = vadd.f32 %v456, %v460
    %v463 = vadd.f32 %v457, %v459
    %v464 = vadd.f32 %v458, %v460
    %v465 = vpack.c.bf16 %v462, %v461
    %v466 = vpack.c.bf16 %v464, %v463
    %v467 = vunpack.c.l.bf16 %v465
    %v468 = vunpack.c.h.bf16 %v465
    %v469 = vunpack.c.l.bf16 %v466
    %v470 = vunpack.c.h.bf16 %v466
    %v471 = vmax.f32 %v467, 0.0
    %v472 = vmax.f32 %v468, 0.0
    %v473 = vmax.f32 %v469, 0.0
    %v474 = vmax.f32 %v470, 0.0
    %v475 = vpack.c.bf16 %v473, %v471
    %v476 = vpack.c.bf16 %v474, %v472
    %v477 = vld [vmem:[#allocation6] sm:$0xf]
    %v478 = vld [vmem:[#allocation6 + $0x4] sm:$0xf]
    %v479 = vld [vmem:[#allocation6 + $0x8] sm:$0xf]
    %v480 = vld [vmem:[#allocation6 + $0xc] sm:$0xf]
    %v481 = vld [vmem:[#allocation6 + $0x10] sm:$0xf]
    %v482 = vld [vmem:[#allocation6 + $0x14] sm:$0xf]
    %v483 = vld [vmem:[#allocation6 + $0x18] sm:$0xf]
    %v484 = vld [vmem:[#allocation6 + $0x1c] sm:$0xf]
    %v485 = vld [vmem:[#allocation6 + $0x20] sm:$0xf]
    %v486 = vld [vmem:[#allocation6 + $0x24] sm:$0xf]
    %v487 = vld [vmem:[#allocation6 + $0x28] sm:$0xf]
    %v488 = vld [vmem:[#allocation6 + $0x2c] sm:$0xf]
    %v489 = vld [vmem:[#allocation6 + $0x30] sm:$0xf]
    %v490 = vld [vmem:[#allocation6 + $0x34] sm:$0xf]
    %v491 = vld [vmem:[#allocation6 + $0x38] sm:$0xf]
    %v492 = vld [vmem:[#allocation6 + $0x3c] sm:$0xf]
    %v493 = vld [vmem:[#allocation6 + $0x40] sm:$0xf]
    %v494 = vld [vmem:[#allocation6 + $0x44] sm:$0xf]
    %v495 = vld [vmem:[#allocation6 + $0x48] sm:$0xf]
    %v496 = vld [vmem:[#allocation6 + $0x4c] sm:$0xf]
    %v497 = vld [vmem:[#allocation6 + $0x50] sm:$0xf]
    %v498 = vld [vmem:[#allocation6 + $0x54] sm:$0xf]
    %v499 = vld [vmem:[#allocation6 + $0x58] sm:$0xf]
    %v500 = vld [vmem:[#allocation6 + $0x5c] sm:$0xf]
    %v501 = vld [vmem:[#allocation6 + $0x60] sm:$0xf]
    %v502 = vld [vmem:[#allocation6 + $0x64] sm:$0xf]
    %v503 = vld [vmem:[#allocation6 + $0x68] sm:$0xf]
    %v504 = vld [vmem:[#allocation6 + $0x6c] sm:$0xf]
    %v505 = vld [vmem:[#allocation6 + $0x70] sm:$0xf]
    %v506 = vld [vmem:[#allocation6 + $0x74] sm:$0xf]
    %v507 = vld [vmem:[#allocation6 + $0x78] sm:$0xf]
    %v508 = vld [vmem:[#allocation6 + $0x7c] sm:$0xf]
    %v541 = vunpack.c.l.b16 %v477
    %v542 = vunpack.c.l.b16 %v478
    %v543 = vunpack.c.l.b16 %v479
    %v544 = vunpack.c.l.b16 %v480
    %v545 = vunpack.c.l.b16 %v481
    %v546 = vunpack.c.l.b16 %v482
    %v547 = vunpack.c.l.b16 %v483
    %v548 = vunpack.c.l.b16 %v484
    %v549 = vunpack.c.l.b16 %v485
    %v550 = vunpack.c.l.b16 %v486
    %v551 = vunpack.c.l.b16 %v487
    %v552 = vunpack.c.l.b16 %v488
    %v553 = vunpack.c.l.b16 %v489
    %v554 = vunpack.c.l.b16 %v490
    %v555 = vunpack.c.l.b16 %v491
    %v556 = vunpack.c.l.b16 %v492
    %v557 = vunpack.c.l.b16 %v493
    %v558 = vunpack.c.l.b16 %v494
    %v559 = vunpack.c.l.b16 %v495
    %v560 = vunpack.c.l.b16 %v496
    %v561 = vunpack.c.l.b16 %v497
    %v562 = vunpack.c.l.b16 %v498
    %v563 = vunpack.c.l.b16 %v499
    %v564 = vunpack.c.l.b16 %v500
    %v565 = vunpack.c.l.b16 %v501
    %v566 = vunpack.c.l.b16 %v502
    %v567 = vunpack.c.l.b16 %v503
    %v568 = vunpack.c.l.b16 %v504
    %v569 = vunpack.c.l.b16 %v505
    %v570 = vunpack.c.l.b16 %v506
    %v571 = vunpack.c.l.b16 %v507
    %v572 = vunpack.c.l.b16 %v508
    %v573 = vpack.c.b16 %v542, %v541
    %v574 = vpack.c.b16 %v544, %v543
    %v575 = vpack.c.b16 %v546, %v545
    %v576 = vpack.c.b16 %v548, %v547
    %v577 = vpack.c.b16 %v550, %v549
    %v578 = vpack.c.b16 %v552, %v551
    %v579 = vpack.c.b16 %v554, %v553
    %v580 = vpack.c.b16 %v556, %v555
    %v581 = vpack.c.b16 %v558, %v557
    %v582 = vpack.c.b16 %v560, %v559
    %v583 = vpack.c.b16 %v562, %v561
    %v584 = vpack.c.b16 %v564, %v563
    %v585 = vpack.c.b16 %v566, %v565
    %v586 = vpack.c.b16 %v568, %v567
    %v587 = vpack.c.b16 %v570, %v569
    %v588 = vpack.c.b16 %v572, %v571
    %605 = vmatpush.bf16.msra.mxu0 %v580
    %606 = vmatpush.bf16.msra.mxu0 %v579
    %607 = vmatpush.bf16.msra.mxu0 %v578
    %608 = vmatpush.bf16.msra.mxu0 %v577
    %609 = vmatpush.bf16.msra.mxu0 %v576
    %610 = vmatpush.bf16.msra.mxu0 %v575
    %611 = vmatpush.bf16.msra.mxu0 %v574
    %612 = vmatpush.bf16.msra.mxu0 %v573
    %613 = vmatmul.bf16.gmra.mxu0 %v475
    %v614 = vpop.f32.mrf.mxu0
    %v615 = vadd.f32 0.0, %v614
    %v616 = vpop.f32.mrf.mxu0
    %v617 = vadd.f32 0.0, %v616
    %618 = vdwg.mxu0
    %619 = vmatpush.bf16.msra.mxu0 %v588
    %620 = vmatpush.bf16.msra.mxu0 %v587
    %621 = vmatpush.bf16.msra.mxu0 %v586
    %622 = vmatpush.bf16.msra.mxu0 %v585
    %623 = vmatpush.bf16.msra.mxu0 %v584
    %624 = vmatpush.bf16.msra.mxu0 %v583
    %625 = vmatpush.bf16.msra.mxu0 %v582
    %626 = vmatpush.bf16.msra.mxu0 %v581
    %627 = vmatmul.bf16.gmra.mxu0 %v476
    %v628 = vpop.f32.mrf.mxu0
    %v629 = vadd.f32 %v615, %v628
    %v630 = vpop.f32.mrf.mxu0
    %v631 = vadd.f32 %v617, %v630
    %632 = vdwg.mxu0
    %v633 = vpack.c.bf16 %v629, %v629
    %v634 = vpack.c.bf16 %v631, %v631
    %v635 = vld [vmem:[%s6] sm:$0x1]
    %v637 = vpack.i.b16 %v635, %v635
    %v639 = vperm.slane %v637, 0
    %v640 = vunpack.c.l.bf16 %v633
    %v641 = vunpack.c.l.bf16 %v634
    %v642 = vunpack.c.l.bf16 %v639
    %v643 = vadd.f32 %v640, %v642
    %v644 = vadd.f32 %v641, %v642
    %v645 = vpack.c.bf16 %v643, %v643
    %v646 = vpack.c.bf16 %v644, %v644
    %v647 = vunpack.c.l.bf16 %v645
    %v648 = vunpack.c.l.bf16 %v646
    %v649 = vmax.f32 %v647, 0.0
    %v650 = vmax.f32 %v648, 0.0
    %v651 = vpack.c.bf16 %v650, %v649
    %v652 = vld [vmem:[#allocation7] sm:$0xf]
    %v653 = vld [vmem:[#allocation7 + $0x4] sm:$0xf]
    %v654 = vld [vmem:[#allocation7 + $0x8] sm:$0xf]
    %v655 = vld [vmem:[#allocation7 + $0xc] sm:$0xf]
    %v656 = vld [vmem:[#allocation7 + $0x10] sm:$0xf]
    %v657 = vld [vmem:[#allocation7 + $0x14] sm:$0xf]
    %v658 = vld [vmem:[#allocation7 + $0x18] sm:$0xf]
    %v659 = vld [vmem:[#allocation7 + $0x1c] sm:$0xf]
    %v660 = vld [vmem:[#allocation7 + $0x20] sm:$0xf]
    %v661 = vld [vmem:[#allocation7 + $0x24] sm:$0xf]
    %v662 = vld [vmem:[#allocation7 + $0x28] sm:$0xf]
    %v663 = vld [vmem:[#allocation7 + $0x2c] sm:$0xf]
    %v664 = vld [vmem:[#allocation7 + $0x30] sm:$0xf]
    %v665 = vld [vmem:[#allocation7 + $0x34] sm:$0xf]
    %v666 = vld [vmem:[#allocation7 + $0x38] sm:$0xf]
    %v667 = vld [vmem:[#allocation7 + $0x3c] sm:$0xf]
    %v684 = vunpack.c.l.b16 %v652
    %v685 = vunpack.c.l.b16 %v653
    %v686 = vunpack.c.l.b16 %v654
    %v687 = vunpack.c.l.b16 %v655
    %v688 = vunpack.c.l.b16 %v656
    %v689 = vunpack.c.l.b16 %v657
    %v690 = vunpack.c.l.b16 %v658
    %v691 = vunpack.c.l.b16 %v659
    %v692 = vunpack.c.l.b16 %v660
    %v693 = vunpack.c.l.b16 %v661
    %v694 = vunpack.c.l.b16 %v662
    %v695 = vunpack.c.l.b16 %v663
    %v696 = vunpack.c.l.b16 %v664
    %v697 = vunpack.c.l.b16 %v665
    %v698 = vunpack.c.l.b16 %v666
    %v699 = vunpack.c.l.b16 %v667
    %v700 = vpack.c.b16 %v685, %v684
    %v701 = vpack.c.b16 %v687, %v686
    %v702 = vpack.c.b16 %v689, %v688
    %v703 = vpack.c.b16 %v691, %v690
    %v704 = vpack.c.b16 %v693, %v692
    %v705 = vpack.c.b16 %v695, %v694
    %v706 = vpack.c.b16 %v697, %v696
    %v707 = vpack.c.b16 %v699, %v698
    %716 = vmatpush.bf16.msra.mxu0 %v707
    %717 = vmatpush.bf16.msra.mxu0 %v706
    %718 = vmatpush.bf16.msra.mxu0 %v705
    %719 = vmatpush.bf16.msra.mxu0 %v704
    %720 = vmatpush.bf16.msra.mxu0 %v703
    %721 = vmatpush.bf16.msra.mxu0 %v702
    %722 = vmatpush.bf16.msra.mxu0 %v701
    %723 = vmatpush.bf16.msra.mxu0 %v700
    %724 = vmatmul.bf16.gmra.mxu0 %v651
    %v725 = vpop.f32.mrf.mxu0
    %v726 = vadd.f32 0.0, %v725
    %v727 = vpop.f32.mrf.mxu0
    %v728 = vadd.f32 0.0, %v727
    %729 = vdwg.mxu0
    %v730 = vpack.c.bf16 %v726, %v726
    %v731 = vpack.c.bf16 %v728, %v728
    %v732 = vld [vmem:[%s8] sm:$0x1]
    %v734 = vpack.i.b16 %v732, %v732
    %v736 = vperm.slane %v734, 0
    %v737 = vunpack.c.l.bf16 %v730
    %v738 = vunpack.c.l.bf16 %v731
    %v739 = vunpack.c.l.bf16 %v736
    %v740 = vadd.f32 %v737, %v739
    %v741 = vadd.f32 %v738, %v739
    %v742 = vpack.c.bf16 %v740, %v740
    %v743 = vpack.c.bf16 %v741, %v741
    %744 = vst [vmem:[%s9] sm:$0xf] %v742
    %745 = vst [vmem:[%s9 + $0x4] sm:$0xf] %v743
    // Predicated region
    $region54: #{actor_critic_forward.1} parent=1 // pred_check
      _
    $region55: #{actor_critic_forward.1} parent=1 // pred_check_branch
      %747 = sbr.rel (0) target = $region57
    $region56: #{actor_critic_forward.1} parent=1 // pred_region
      _
    $region57: #{actor_critic_forward.1} parent=1 // pred_fallthru
      _
    // Predicated region
    $region58: #{actor_critic_forward.1} parent=1 // pred_check
      _
    $region59: #{actor_critic_forward.1} parent=1 // pred_check_branch
      %749 = sbr.rel (0) target = $region61
    $region60: #{actor_critic_forward.1} parent=1 // pred_region
      _
    $region61: #{actor_critic_forward.1} parent=1 // pred_fallthru
      _
    %750 = vsyncpa [#allocation3], 1
    %751 = vsyncpa [#allocation5], 1
    %752 = vsyncpa [#allocation8], 1

</llo_original>
